<compile_context>
chip_gen: v7x
topology: tpu7x:2x2x1
jax: 0.10.0
libtpu: 0.0.40
codegen_flags: <defaults>
</compile_context>

<pallas_src>
import math
from typing import NamedTuple

import jax
import jax.numpy as jnp
from jax.experimental import pallas as pl
from jax.experimental.pallas import tpu as pltpu


def _round_up(x, m):
    return (x + m - 1) // m * m


# Per-call tile budget (double-buffered inputs/outputs + f32 acc) and the
# scoped-VMEM limit we request.  48 MiB is below v7x's 64 MiB physical VMEM
# and well below v5e/v6e's 128 MiB.
_VMEM_TILE_BUDGET = 26 * 1024 * 1024
_VMEM_LIMIT_BYTES = 48 * 1024 * 1024


class GeneratorParams(NamedTuple):
    """Pre-padded, pre-cast projection parameters (built once at load time)."""
    weight_p: jax.Array   # (kp, np_)  compute dtype, zero-padded, pre-transposed
    bias_p: jax.Array     # (1, np_)   float32, zero-padded
    d_model: int
    out_size: int
    tn: int               # lane tile chosen at prepare time; divides np_


def prepare_generator_params(weight_t, bias, *, compute_dtype=jnp.bfloat16,
                             tn_target=1024):
    """Pad the (d_model, out_size) weight to lane-dense tiles and cast ONCE.

    weight_t is already transposed w.r.t. torch nn.Linear's (out_size, d_model)
    layout, so the forward pass never transposes or re-pads it.
    """
    d_model, out_size = weight_t.shape
    n128 = _round_up(out_size, 128)
    if n128 <= tn_target:
        tn, np_ = n128, n128
    else:
        tn = tn_target
        np_ = _round_up(out_size, tn)
    kp = _round_up(d_model, 128)

    wp = weight_t
    if (kp, np_) != (d_model, out_size):
        wp = jnp.pad(weight_t, ((0, kp - d_model), (0, np_ - out_size)))
    wp = wp.astype(compute_dtype)

    bp = bias
    if np_ != out_size:
        bp = jnp.pad(bias, (0, np_ - out_size))
    bp = bp.reshape(1, np_).astype(jnp.float32)

    return GeneratorParams(wp, bp, d_model, out_size, tn)


# ----------------------------------------------------------------------------
# Kernels
# ----------------------------------------------------------------------------
def _linear_bias_kernel(x_ref, w_ref, b_ref, o_ref):
    """Collapsed-K path: full reduction in one MXU call, no scratch."""
    acc = jnp.dot(x_ref[...], w_ref[...], preferred_element_type=jnp.float32)
    o_ref[...] = (acc + b_ref[...]).astype(o_ref.dtype)


def _linear_bias_acc_kernel(x_ref, w_ref, b_ref, o_ref, acc_ref):
    """K-tiled path: f32 accumulator resident across k; last step folded into
    the epilogue (saves one (tm, tn) f32 VMEM read+write per output tile)."""
    k = pl.program_id(2)
    nk = pl.num_programs(2)

    @pl.when(k == 0)
    def _():
        acc_ref[...] = jnp.zeros_like(acc_ref)

    partial = jnp.dot(x_ref[...], w_ref[...], preferred_element_type=jnp.float32)

    @pl.when(k < nk - 1)
    def _():
        acc_ref[...] += partial

    @pl.when(k == nk - 1)
    def _():
        o_ref[...] = (acc_ref[...] + partial + b_ref[...]).astype(o_ref.dtype)


# ----------------------------------------------------------------------------
# Forward
# ----------------------------------------------------------------------------
def generator_forward(x, params: GeneratorParams, *, tm_target=512,
                      tk_target=2048, force_k_tiling=False):
    """Equivalent of Generator.forward (linear projection).

    x:      (..., d_model)
    params: GeneratorParams from prepare_generator_params()
    returns (..., out_size) in x.dtype
    """
    d_model, out_size = params.d_model, params.out_size
    if x.shape[-1] != d_model:
        raise ValueError(f"x last dim {x.shape[-1]} != d_model {d_model}")
    kp, np_ = params.weight_p.shape
    tn = params.tn
    compute_dtype = params.weight_p.dtype
    in_isz = jnp.dtype(compute_dtype).itemsize

    lead = x.shape[:-1]
    m = math.prod(lead) if lead else 1
    out_dtype = x.dtype
    out_isz = jnp.dtype(out_dtype).itemsize

    # --- M tiling (granule 16 covers bf16/f32 sublane packing) ---------------
    mp16 = _round_up(m, 16)
    if mp16 <= tm_target:
        tm, mp = mp16, mp16
    else:
        tm = tm_target
        mp = _round_up(m, tm)
    gm, gn = mp // tm, np_ // tn

    def est_vmem(tk, with_acc):
        b = 2 * tm * tk * in_isz          # x tile, double-buffered
        b += 2 * tk * tn * in_isz         # weight tile, double-buffered
        b += 2 * tn * 4                   # bias tile
        b += 2 * tm * tn * out_isz        # output tile
        if with_acc:
            b += tm * tn * 4              # f32 accumulator scratch
        return b

    # --- pad & cast activations only (cheap; weight was prepared at load) ----
    x2d = x.reshape(m, d_model)
    xp = x2d
    if (mp, kp) != (m, d_model):
        xp = jnp.pad(x2d, ((0, mp - m), (0, kp - d_model)))
    xp = xp.astype(compute_dtype)

    flops = 2 * mp * kp * np_

    use_collapsed_k = (not force_k_tiling) and (
        est_vmem(kp, with_acc=False) <= _VMEM_TILE_BUDGET)

    if use_collapsed_k:
        # x read once, weight re-streamed once per M tile.
        bytes_accessed = int(mp * kp * in_isz
                             + gm * kp * np_ * in_isz
                             + gm * np_ * 4
                             + mp * np_ * out_isz)
        out2d = pl.pallas_call(
            _linear_bias_kernel,
            out_shape=jax.ShapeDtypeStruct((mp, np_), out_dtype),
            grid_spec=pltpu.PrefetchScalarGridSpec(
                num_scalar_prefetch=0,
                grid=(gm, gn),
                in_specs=[
                    pl.BlockSpec((tm, kp), lambda i, j: (i, 0)),   # x slab
                    pl.BlockSpec((kp, tn), lambda i, j: (0, j)),   # weight slab
                    pl.BlockSpec((1, tn), lambda i, j: (0, j)),    # bias
                ],
                out_specs=pl.BlockSpec((tm, tn), lambda i, j: (i, j)),
            ),
            compiler_params=pltpu.CompilerParams(
                dimension_semantics=("parallel", "parallel"),
                vmem_limit_bytes=_VMEM_LIMIT_BYTES,
            ),
            cost_estimate=pl.CostEstimate(
                flops=flops, transcendentals=0, bytes_accessed=bytes_accessed),
        )(xp, params.weight_p, params.bias_p)
    else:
        # --- choose tk: largest multiple-of-128 divisor of kp under budget ---
        tk_cap = min(_round_up(tk_target, 128), kp)
        while tk_cap > 128 and est_vmem(tk_cap, with_acc=True) > _VMEM_TILE_BUDGET:
            tk_cap -= 128
        tk = 128
        for cand in range(tk_cap, 127, -128):
            if kp % cand == 0:
                tk = cand
                break
        gk = kp // tk

        bytes_accessed = int(gn * mp * kp * in_isz
                             + gm * kp * np_ * in_isz
                             + gm * gn * np_ * 4
                             + mp * np_ * out_isz)
        out2d = pl.pallas_call(
            _linear_bias_acc_kernel,
            out_shape=jax.ShapeDtypeStruct((mp, np_), out_dtype),
            grid_spec=pltpu.PrefetchScalarGridSpec(
                num_scalar_prefetch=0,
                grid=(gm, gn, gk),
                in_specs=[
                    pl.BlockSpec((tm, tk), lambda i, j, k: (i, k)),  # x tile
                    pl.BlockSpec((tk, tn), lambda i, j, k: (k, j)),  # weight tile
                    pl.BlockSpec((1, tn), lambda i, j, k: (0, j)),   # bias
                ],
                out_specs=pl.BlockSpec((tm, tn), lambda i, j, k: (i, j)),
                scratch_shapes=[pltpu.VMEM((tm, tn), jnp.float32)],
            ),
            compiler_params=pltpu.CompilerParams(
                dimension_semantics=("parallel", "parallel", "arbitrary"),
                vmem_limit_bytes=_VMEM_LIMIT_BYTES,
            ),
            cost_estimate=pl.CostEstimate(
                flops=flops, transcendentals=0, bytes_accessed=bytes_accessed),
        )(xp, params.weight_p, params.bias_p)

    out = out2d[:m, :out_size]
    return out.reshape(*lead, out_size)


def init_generator_params(key, d_model, out_size, dtype=jnp.float32):
    """torch nn.Linear default init (uniform +/- 1/sqrt(fan_in)), weight
    returned already transposed to (d_model, out_size)."""
    k_w, k_b = jax.random.split(key)
    bound = 1.0 / math.sqrt(d_model)
    weight_t = jax.random.uniform(
        k_w, (d_model, out_size), dtype=dtype, minval=-bound, maxval=bound)
    bias = jax.random.uniform(
        k_b, (out_size,), dtype=dtype, minval=-bound, maxval=bound)
    return weight_t, bias


if __name__ == "__main__":
    # Small shapes consistent with the module: batch=2, seq=8, d_model=32, out_size=16
    batch, seq, d_model, out_size = 2, 8, 32, 16

    key = jax.random.PRNGKey(0)
    k_x, k_p, k_x2, k_p2 = jax.random.split(key, 4)

    x = jax.random.normal(k_x, (batch, seq, d_model), dtype=jnp.float32)
    weight_t, bias = init_generator_params(k_p, d_model, out_size)
    ref = x @ weight_t + bias

    # bf16 MXU path (f32 accumulation) -- collapsed-K fast path.
    params_bf16 = prepare_generator_params(weight_t, bias, compute_dtype=jnp.bfloat16)
    out = jax.block_until_ready(generator_forward(x, params_bf16))
    assert out.shape == (batch, seq, out_size)
    assert jnp.allclose(out, ref, atol=5e-2, rtol=5e-2), float(
        jnp.max(jnp.abs(out - ref)))

    # f32 compute path validates kernel math tightly.
    params_f32 = prepare_generator_params(weight_t, bias, compute_dtype=jnp.float32)
    out_f32 = jax.block_until_ready(generator_forward(x, params_f32))
    assert jnp.allclose(out_f32, ref, atol=1e-5, rtol=1e-5)

    # Exercise the K-tiled accumulator path on a slightly larger d_model.
    d2, o2 = 256, 384
    x2 = jax.random.normal(k_x2, (batch, seq, d2), dtype=jnp.float32)
    w2, b2 = init_generator_params(k_p2, d2, o2)
    ref2 = x2 @ w2 + b2
    params2 = prepare_generator_params(w2, b2, compute_dtype=jnp.float32)
    out2 = jax.block_until_ready(
        generator_forward(x2, params2, tk_target=128, force_k_tiling=True))
    assert out2.shape == (batch, seq, o2)
    assert jnp.allclose(out2, ref2, atol=1e-4, rtol=1e-4), float(
        jnp.max(jnp.abs(out2 - ref2)))

    print("KERNEL_OK")
</pallas_src>

<mosaic_0001>
module attributes {stable_mosaic.version = 11 : i64} {
  func.func @_linear_bias_kernel(%arg0: i32, %arg1: i32, %arg2: memref<16x128xbf16, #tpu.memory_space<vmem>>, %arg3: memref<128x128xbf16, #tpu.memory_space<vmem>>, %arg4: memref<1x128xf32, #tpu.memory_space<vmem>>, %arg5: memref<16x128xf32, #tpu.memory_space<vmem>>) attributes {dimension_semantics = [#tpu.dimension_semantics<parallel>, #tpu.dimension_semantics<parallel>], iteration_bounds = array<i64: 1, 1>, scalar_prefetch = 0 : i64, scratch_operands = 0 : i64, tpu.core_type = #tpu.core_type<tc>, window_params = [{transform_indices = @transform_0, window_bounds = array<i64: 16, 128>}, {transform_indices = @transform_1, window_bounds = array<i64: 128, 128>}, {transform_indices = @transform_2, window_bounds = array<i64: 1, 128>}, {transform_indices = @transform_3, window_bounds = array<i64: 16, 128>}]} {
    %c0 = arith.constant 0 : index
    %c0_0 = arith.constant 0 : index
    %0 = vector.load %arg2[%c0, %c0_0] : memref<16x128xbf16, #tpu.memory_space<vmem>>, vector<16x128xbf16>
    %c0_1 = arith.constant 0 : index
    %c0_2 = arith.constant 0 : index
    %1 = vector.load %arg3[%c0_1, %c0_2] : memref<128x128xbf16, #tpu.memory_space<vmem>>, vector<128x128xbf16>
    %cst = arith.constant dense<0.000000e+00> : vector<16x128xf32>
    %2 = tpu.matmul %0, %1, %cst {dimension_numbers = #tpu.dot_dimension_numbers<[1], [0], [0], [1], [0, 0, 1, 1], [], []>} : vector<16x128xbf16>, vector<128x128xbf16>, vector<16x128xf32> -> vector<16x128xf32>
    %c0_3 = arith.constant 0 : index
    %c0_4 = arith.constant 0 : index
    %3 = vector.load %arg4[%c0_3, %c0_4] : memref<1x128xf32, #tpu.memory_space<vmem>>, vector<1x128xf32>
    %4 = vector.broadcast %3 : vector<1x128xf32> to vector<16x128xf32>
    %5 = arith.addf %2, %4 : vector<16x128xf32>
    %c0_5 = arith.constant 0 : index
    %c0_6 = arith.constant 0 : index
    %6 = vector.load %arg5[%c0_5, %c0_6] : memref<16x128xf32, #tpu.memory_space<vmem>>, vector<16x128xf32>
    tpu.vector_store %arg5[%c0_5, %c0_6], %5 {strides = array<i32>} : memref<16x128xf32, #tpu.memory_space<vmem>>, vector<16x128xf32>,
    return
  }
  func.func @transform_0(%arg0: i32, %arg1: i32) -> (i32, i32) {
    %c0_i32 = arith.constant 0 : i32
    %c0_i32_0 = arith.constant 0 : i32
    return %arg0, %c0_i32 : i32, i32
  }
  func.func @transform_1(%arg0: i32, %arg1: i32) -> (i32, i32) {
    %c0_i32 = arith.constant 0 : i32
    %c0_i32_0 = arith.constant 0 : i32
    return %c0_i32, %arg1 : i32, i32
  }
  func.func @transform_2(%arg0: i32, %arg1: i32) -> (i32, i32) {
    %c0_i32 = arith.constant 0 : i32
    %c0_i32_0 = arith.constant 0 : i32
    return %c0_i32, %arg1 : i32, i32
  }
  func.func @transform_3(%arg0: i32, %arg1: i32) -> (i32, i32) {
    %c0_i32 = arith.constant 0 : i32
    return %arg0, %arg1 : i32, i32
  }
}

</mosaic_0001>

<llo_original>
// kernel: tpu_custom_call.1
$region0: #{tpu_custom_call.1}
  #allocation0 [shape = 'u32[]', space=smem, size = 0x4, offset = 0x4, fixed_abs, tag = 'smem constant byte address 0x4 - core index']
  #allocation1 [shape = 'u32[144,128]{1,0:T(1,128)}', space=vmem, size = 0x12000, scoped, tag = 'internal scratch']
  %s0 = inlined_call_operand.hbm [shape: bf16[16,128], index: 0, kind: input, shape index: {}]
  %s1 = inlined_call_operand.hbm [shape: bf16[128,128], index: 1, kind: input, shape index: {}]
  %s2 = inlined_call_operand.vmem [shape: f32[1,128], index: 2, kind: input, shape index: {}]
  %s3 = inlined_call_operand.hbm [shape: f32[16,128], index: 3, kind: output, shape index: {}]
  %s4 = sld [smem:[#allocation0]]
  $region30: #{tpu_custom_call.1} parent=0
    _
  %s6 = ssub.s32 1, %s4
  %s7 = scalar_select 0, %s6, %s4
  $region1: #{tpu_custom_call.1} parent=0
    #allocation2 [shape = 'u8[4096]{0}', space=vmem, size = 0x1000, scoped, tag = 'input window, operand 0, single buffered']
    #allocation3 [shape = 's32[1]{0}', space=sflag, size = 0x4, scoped, tag = 'scoped memory for tpu_custom_call.1']
    #allocation4 [shape = 's32[1]{0}', space=sflag, size = 0x4, scoped, tag = 'scoped memory for tpu_custom_call.1']
    #allocation5 [shape = 'u8[32768]{0}', space=vmem, size = 0x8000, scoped, tag = 'input window, operand 1, single buffered']
    #allocation6 [shape = 's32[1]{0}', space=sflag, size = 0x4, scoped, tag = 'scoped memory for tpu_custom_call.1']
    #allocation7 [shape = 'u8[8192]{0}', space=vmem, size = 0x2000, scoped, tag = 'output window, operand 0, single buffered']
    %8 = vsyncpa [#allocation3], 0
    %9 = vsyncpa [#allocation6], 0
    %10 = vsyncpa [#allocation4], 0
    // Predicated region
    $region2: #{tpu_custom_call.1} parent=1 // pred_check
      _
    $region3: #{tpu_custom_call.1} parent=1 // pred_check_branch
      %12 = sbr.rel (0) target = $region5
    $region4: #{tpu_custom_call.1} parent=1 // pred_region
      %s14 = ssub.s32 128, 128
      %15 = vsyncadd [#allocation3], %s14
      %s16 = sshll.u32 [#allocation2], 4
      %s17 = int_to_ptr.vmem [resolvable:$true] %s16
      %22 = dma.hbm_to_vmem [thread:$0]  %s0, 128, %s17, [#allocation3], 64, 64, 4
    $region5: #{tpu_custom_call.1} parent=1 // pred_fallthru
      _
    // Predicated region
    $region6: #{tpu_custom_call.1} parent=1 // pred_check
      _
    $region7: #{tpu_custom_call.1} parent=1 // pred_check_branch
      %24 = sbr.rel (0) target = $region9
    $region8: #{tpu_custom_call.1} parent=1 // pred_region
      %s26 = ssub.s32 1024, 1024
      %27 = vsyncadd [#allocation6], %s26
      %s28 = sshll.u32 [#allocation5], 4
      %s29 = int_to_ptr.vmem [resolvable:$true] %s28
      %34 = dma.hbm_to_vmem [thread:$0]  %s1, 1024, %s29, [#allocation6], 64, 64, 4
    $region9: #{tpu_custom_call.1} parent=1 // pred_fallthru
      _
    // Predicated region
    $region10: #{tpu_custom_call.1} parent=1 // pred_check
      _
    $region11: #{tpu_custom_call.1} parent=1 // pred_check_branch
      %36 = sbr.rel (0) target = $region13
    $region12: #{tpu_custom_call.1} parent=1 // pred_region
      _
    $region13: #{tpu_custom_call.1} parent=1 // pred_fallthru
      _
    // Predicated region
    $region14: #{tpu_custom_call.1} parent=1 // pred_check
      _
    $region15: #{tpu_custom_call.1} parent=1 // pred_check_branch
      %38 = sbr.rel (0) target = $region17
    $region16: #{tpu_custom_call.1} parent=1 // pred_region
      %39 = dma.done [#allocation3], 128
    $region17: #{tpu_custom_call.1} parent=1 // pred_fallthru
      _
    // Predicated region
    $region18: #{tpu_custom_call.1} parent=1 // pred_check
      _
    $region19: #{tpu_custom_call.1} parent=1 // pred_check_branch
      %41 = sbr.rel (0) target = $region21
    $region20: #{tpu_custom_call.1} parent=1 // pred_region
      %42 = dma.done [#allocation6], 1024
    $region21: #{tpu_custom_call.1} parent=1 // pred_fallthru
      _
    %v44 = vld [vmem:[#allocation2] sm:$0xf]
    %v45 = vld [vmem:[#allocation2 + $0x4] sm:$0xf]
    %v46 = vld [vmem:[#allocation5] sm:$0xf]
    %v47 = vld [vmem:[#allocation5 + $0x4] sm:$0xf]
    %v48 = vld [vmem:[#allocation5 + $0x8] sm:$0xf]
    %v49 = vld [vmem:[#allocation5 + $0xc] sm:$0xf]
    %v50 = vld [vmem:[#allocation5 + $0x10] sm:$0xf]
    %v51 = vld [vmem:[#allocation5 + $0x14] sm:$0xf]
    %v52 = vld [vmem:[#allocation5 + $0x18] sm:$0xf]
    %v53 = vld [vmem:[#allocation5 + $0x1c] sm:$0xf]
    %v54 = vld [vmem:[#allocation5 + $0x20] sm:$0xf]
    %v55 = vld [vmem:[#allocation5 + $0x24] sm:$0xf]
    %v56 = vld [vmem:[#allocation5 + $0x28] sm:$0xf]
    %v57 = vld [vmem:[#allocation5 + $0x2c] sm:$0xf]
    %v58 = vld [vmem:[#allocation5 + $0x30] sm:$0xf]
    %v59 = vld [vmem:[#allocation5 + $0x34] sm:$0xf]
    %v60 = vld [vmem:[#allocation5 + $0x38] sm:$0xf]
    %v61 = vld [vmem:[#allocation5 + $0x3c] sm:$0xf]
    %v62 = vld [vmem:[%s2] sm:$0x1]
    %v64 = vlaneseq
    %v65 = vshrl.u32 %v64, 7
    %v66 = vsub.s32 0, %v65
    %v67 = vrot.slane %v62, %v66
    %v71 = vunpack.c.l.b16 %v44
    %v72 = vunpack.c.l.b16 %v45
    %v73 = vpack.c.b16 %v72, %v71
    %v91 = vunpack.c.l.b16 %v46
    %v92 = vunpack.c.l.b16 %v47
    %v93 = vunpack.c.l.b16 %v48
    %v94 = vunpack.c.l.b16 %v49
    %v95 = vunpack.c.l.b16 %v50
    %v96 = vunpack.c.l.b16 %v51
    %v97 = vunpack.c.l.b16 %v52
    %v98 = vunpack.c.l.b16 %v53
    %v99 = vunpack.c.l.b16 %v54
    %v100 = vunpack.c.l.b16 %v55
    %v101 = vunpack.c.l.b16 %v56
    %v102 = vunpack.c.l.b16 %v57
    %v103 = vunpack.c.l.b16 %v58
    %v104 = vunpack.c.l.b16 %v59
    %v105 = vunpack.c.l.b16 %v60
    %v106 = vunpack.c.l.b16 %v61
    %v107 = vpack.c.b16 %v92, %v91
    %v108 = vpack.c.b16 %v94, %v93
    %v109 = vpack.c.b16 %v96, %v95
    %v110 = vpack.c.b16 %v98, %v97
    %v111 = vpack.c.b16 %v100, %v99
    %v112 = vpack.c.b16 %v102, %v101
    %v113 = vpack.c.b16 %v104, %v103
    %v114 = vpack.c.b16 %v106, %v105
    %123 = vmatprep.subr.bf16.mxu0 0
    %124 = vmatpush1.bf16.msra.mxu0 %v107
    %125 = vmatprep.subr.bf16.mxu0 0
    %126 = vmatpush1.bf16.msra.mxu0 %v108
    %127 = vmatprep.subr.bf16.mxu0 0
    %128 = vmatpush1.bf16.msra.mxu0 %v109
    %129 = vmatprep.subr.bf16.mxu0 0
    %130 = vmatpush1.bf16.msra.mxu0 %v110
    %131 = vmatprep.subr.bf16.mxu0 0
    %132 = vmatpush1.bf16.msra.mxu0 %v111
    %133 = vmatprep.subr.bf16.mxu0 0
    %134 = vmatpush1.bf16.msra.mxu0 %v112
    %135 = vmatprep.subr.bf16.mxu0 0
    %136 = vmatpush1.bf16.msra.mxu0 %v113
    %137 = vmatprep.subr.bf16.mxu0 0
    %138 = vmatpush1.bf16.msra.mxu0 %v114
    %139 = vmatprep.subr.bf16.mxu0 0
    %140 = vmatpush1.bf16.msra.mxu0 0
    %141 = vmatprep.subr.bf16.mxu0 0
    %142 = vmatpush1.bf16.msra.mxu0 0
    %143 = vmatprep.subr.bf16.mxu0 0
    %144 = vmatpush1.bf16.msra.mxu0 0
    %145 = vmatprep.subr.bf16.mxu0 0
    %146 = vmatpush1.bf16.msra.mxu0 0
    %147 = vmatprep.subr.bf16.mxu0 0
    %148 = vmatpush1.bf16.msra.mxu0 0
    %149 = vmatprep.subr.bf16.mxu0 0
    %150 = vmatpush1.bf16.msra.mxu0 0
    %151 = vmatprep.subr.bf16.mxu0 0
    %152 = vmatpush1.bf16.msra.mxu0 0
    %153 = vmatprep.subr.bf16.mxu0 0
    %154 = vmatpush1.bf16.msra.mxu0 0
    %155 = vmatprep.mubr.bf16.mxu0 0
    %156 = vmatmul.mubr.bf16.gmra.mrb[0].mxu0 %v73
    %v157 = vpop.f32.mrb[0].mxu0
    %v158 = vadd.f32 %v67, %v157
    %v159 = vpop.f32.mrb[0].mxu0
    %v160 = vpop.f32.mrb[0].mxu0
    %v161 = vadd.f32 %v67, %v160
    %v162 = vpop.f32.mrb[0].mxu0
    %163 = vdwg.mxu0
    %164 = vst [vmem:[#allocation7] sm:$0xff] %v158
    %165 = vst [vmem:[#allocation7 + $0x8] sm:$0xff] %v161
    // Predicated region
    $region22: #{tpu_custom_call.1} parent=1 // pred_check
      _
    $region23: #{tpu_custom_call.1} parent=1 // pred_check_branch
      %167 = sbr.rel (0) target = $region25
    $region24: #{tpu_custom_call.1} parent=1 // pred_region
      %s169 = ssub.s32 256, 256
      %170 = vsyncadd [#allocation4], %s169
      %s171 = sshll.u32 [#allocation7], 4
      %s172 = int_to_ptr.vmem [resolvable:$true] %s171
      %177 = dma.vmem_to_hbm [thread:$0]  %s172, 256, %s3, [#allocation4], 128, 128, 8
    $region25: #{tpu_custom_call.1} parent=1 // pred_fallthru
      _
    // Predicated region
    $region26: #{tpu_custom_call.1} parent=1 // pred_check
      _
    $region27: #{tpu_custom_call.1} parent=1 // pred_check_branch
      %179 = sbr.rel (0) target = $region29
    $region28: #{tpu_custom_call.1} parent=1 // pred_region
      %180 = dma.done [#allocation4], 256
    $region29: #{tpu_custom_call.1} parent=1 // pred_fallthru
      _
    %181 = vsyncpa [#allocation3], 1
    %182 = vsyncpa [#allocation6], 1
    %183 = vsyncpa [#allocation4], 1

</llo_original>
